<compile_context>
chip_gen: v7x
topology: tpu7x:2x2x1
jax: 0.10.0
libtpu: 0.0.40
codegen_flags: <defaults>
</compile_context>

<pallas_src>
import functools

import jax
import jax.numpy as jnp
import numpy as np
from jax import lax
from jax.experimental import pallas as pl
from jax.experimental.pallas import tpu as pltpu


def _cdiv(a, b):
    return -(-a // b)


def _round_up(x, m):
    return _cdiv(x, m) * m


# ----------------------------------------------------------------------------
# Pallas kernels
# ----------------------------------------------------------------------------
def _matmul_bias_act_kernel(a_ref, w_ref, b_ref, o_ref, acc_ref, *, activation):
    """One (tm, tn) output tile; K is the last (reduction) grid axis.

    a:(tm,tk) bf16, w:(tk,tn) bf16, b:(1,tn) f32, o:(tm,tn) f32, acc:(tm,tn) f32.
    """
    @pl.when(pl.program_id(2) == 0)
    def _():
        acc_ref[...] = jnp.zeros_like(acc_ref)

    acc_ref[...] += jnp.dot(a_ref[...], w_ref[...],
                            preferred_element_type=jnp.float32)

    @pl.when(pl.program_id(2) == pl.num_programs(2) - 1)
    def _():
        y = acc_ref[...] + b_ref[...]
        if activation == "relu":
            y = jnp.maximum(y, 0.0)
        elif activation == "lrelu":
            y = jnp.where(y >= 0.0, y, 0.2 * y)
        elif activation == "tanh":
            y = jnp.tanh(y)
        elif activation == "none":
            pass
        else:
            raise ValueError(f"unsupported activation {activation}")
        o_ref[...] = y.astype(o_ref.dtype)


def matmul_bias_act(a, w, b, activation):
    """act(a @ w + b) with lane-dense (128-padded) output columns.

    a:(M,K), w:(K,cout), b:(cout,). Returns (M,cout) float32.
    """
    M, K = a.shape
    K2, cout = w.shape
    assert K == K2

    coutp = _round_up(cout, 128)   # lane-dense stores + full MXU N dimension
    kp = _round_up(K, 128)         # fill the systolic array contraction (v5e)

    # M tiling: big tiles (<=512 rows), but >=2 blocks when there is real work
    # so both v7x TensorCores get a share of the "parallel" M axis.
    n_blk = max(1, _cdiv(M, 512))
    if M >= 64:
        n_blk = max(n_blk, 2)
    tm = _round_up(_cdiv(M, n_blk), 8)
    mp = _round_up(M, tm)

    tn = 256 if coutp % 256 == 0 else 128
    tk = 512 if kp % 512 == 0 else (256 if kp % 256 == 0 else 128)

    a_p = a.astype(jnp.bfloat16)
    if (mp, kp) != (M, K):
        a_p = jnp.pad(a_p, ((0, mp - M), (0, kp - K)))
    w_p = w.astype(jnp.bfloat16)
    if (kp, coutp) != (K, cout):
        w_p = jnp.pad(w_p, ((0, kp - K), (0, coutp - cout)))
    b_p = b.reshape(1, cout).astype(jnp.float32)
    if coutp != cout:
        b_p = jnp.pad(b_p, ((0, 0), (0, coutp - cout)))

    grid = (mp // tm, coutp // tn, kp // tk)
    out = pl.pallas_call(
        functools.partial(_matmul_bias_act_kernel, activation=activation),
        out_shape=jax.ShapeDtypeStruct((mp, coutp), jnp.float32),
        grid_spec=pltpu.PrefetchScalarGridSpec(
            num_scalar_prefetch=0,
            grid=grid,
            in_specs=[
                pl.BlockSpec((tm, tk), lambda i, j, k: (i, k)),
                pl.BlockSpec((tk, tn), lambda i, j, k: (k, j)),
                pl.BlockSpec((1, tn), lambda i, j, k: (0, j)),
            ],
            out_specs=pl.BlockSpec((tm, tn), lambda i, j, k: (i, j)),
            scratch_shapes=[pltpu.VMEM((tm, tn), jnp.float32)],
        ),
        compiler_params=pltpu.CompilerParams(
            dimension_semantics=("parallel", "parallel", "arbitrary")),
    )(a_p, w_p, b_p)
    return out[:M, :cout]


def _avgpool_sigmoid_kernel(p_ref, inv_ref, o_ref, *, apply_sigmoid):
    """p:(9,TL) pool-window taps, inv:(1,TL) reciprocal divisors, o:(1,TL)."""
    y = jnp.sum(p_ref[...], axis=0, keepdims=True) * inv_ref[...]
    if apply_sigmoid:
        # numerically stable sigmoid routed through a single EUP tanh
        y = 0.5 * (jnp.tanh(0.5 * y) + 1.0)
    o_ref[...] = y.astype(o_ref.dtype)


# ----------------------------------------------------------------------------
# JAX glue: im2col for conv, lane-dense window extraction for avg-pool
# ----------------------------------------------------------------------------
def conv2d_block(x, w, b, stride, padding, activation):
    """x:(N,H,W,Cin), w:(KH,KW,Cin,Cout), b:(Cout,). Zero padding ('zero')."""
    N, H, W, cin = x.shape
    KH, KW, cin_w, cout = w.shape
    assert cin == cin_w
    # bf16 activations for the im2col slab / matmul; f32 accumulate in-kernel.
    xp = jnp.pad(x.astype(jnp.bfloat16),
                 ((0, 0), (padding, padding), (padding, padding), (0, 0)))
    Hp, Wp = H + 2 * padding, W + 2 * padding
    Ho = (Hp - KH) // stride + 1
    Wo = (Wp - KW) // stride + 1
    cols = []
    for i in range(KH):
        for j in range(KW):
            cols.append(
                lax.slice(
                    xp,
                    (0, i, j, 0),
                    (N, i + stride * (Ho - 1) + 1, j + stride * (Wo - 1) + 1, cin),
                    (1, stride, stride, 1),
                )
            )
    # TODO(synk): the im2col slab is still materialized in HBM (bf16 halves it);
    # fully fusing patch extraction into the kernel needs halo/overlapping input
    # blocks that BlockSpec cannot express without a manual-DMA rewrite.
    patches = jnp.stack(cols, axis=3)            # (N, Ho, Wo, KH*KW, Cin)
    a = patches.reshape(N * Ho * Wo, KH * KW * cin)
    wm = w.reshape(KH * KW * cin, cout)
    out = matmul_bias_act(a, wm, b, activation)  # (M, cout) f32
    return out.reshape(N, Ho, Wo, cout)


def avg_pool_3x3_s2_p1(x, apply_sigmoid):
    """AvgPool2d(3, stride=2, padding=1, count_include_pad=False) [+ sigmoid]."""
    N, H, W, C = x.shape
    xp = jnp.pad(x, ((0, 0), (1, 1), (1, 1), (0, 0)))
    onep = jnp.pad(jnp.ones((1, H, W, 1), jnp.float32),
                   ((0, 0), (1, 1), (1, 1), (0, 0)))
    Ho = (H + 2 - 3) // 2 + 1
    Wo = (W + 2 - 3) // 2 + 1
    cols, cnt = [], 0.0
    for i in range(3):
        for j in range(3):
            lim_h = i + 2 * (Ho - 1) + 1
            lim_w = j + 2 * (Wo - 1) + 1
            cols.append(lax.slice(xp, (0, i, j, 0), (N, lim_h, lim_w, C),
                                  (1, 2, 2, 1)))
            cnt = cnt + lax.slice(onep, (0, i, j, 0), (1, lim_h, lim_w, 1),
                                  (1, 2, 2, 1))
    M = N * Ho * Wo * C
    # Lane-dense layout: 9 taps on the sublane axis, flattened (N,Ho,Wo,C) on
    # the lane axis. Reciprocal of the valid-element count is precomputed.
    patches = jnp.stack(cols, axis=0).reshape(9, M).astype(jnp.float32)
    inv = jnp.broadcast_to(1.0 / cnt, (N, Ho, Wo, C)).reshape(1, M)

    if M > 512:
        tl = 512
        mp = _round_up(M, tl)
    else:
        mp = _round_up(M, 128)
        tl = mp
    if mp != M:
        patches = jnp.pad(patches, ((0, 0), (0, mp - M)))
        inv = jnp.pad(inv, ((0, 0), (0, mp - M)), constant_values=1.0)

    out = pl.pallas_call(
        functools.partial(_avgpool_sigmoid_kernel, apply_sigmoid=apply_sigmoid),
        out_shape=jax.ShapeDtypeStruct((1, mp), jnp.float32),
        grid_spec=pltpu.PrefetchScalarGridSpec(
            num_scalar_prefetch=0,
            grid=(mp // tl,),
            in_specs=[
                pl.BlockSpec((9, tl), lambda i: (0, i)),
                pl.BlockSpec((1, tl), lambda i: (0, i)),
            ],
            out_specs=pl.BlockSpec((1, tl), lambda i: (0, i)),
        ),
        compiler_params=pltpu.CompilerParams(dimension_semantics=("parallel",)),
    )(patches, inv)
    return out[0, :M].reshape(N, Ho, Wo, C)


# ----------------------------------------------------------------------------
# Discriminator (parameters built deterministically in-script)
# ----------------------------------------------------------------------------
class DiscriminatorPallas:
    def __init__(self, input_dim, n_layer, dim, activ, pad, num_scales, key):
        # TODO(synk): only pad_type='zero' is implemented (reflect/replicate omitted)
        assert pad == "zero"
        self.params = []  # per scale: list of (w, b, stride, padding, activation)
        for _ in range(num_scales):
            layers = []
            cin, cout = input_dim, dim
            for _l in range(n_layer):
                key, k1, k2 = jax.random.split(key, 3)
                w = jax.random.normal(k1, (4, 4, cin, cout), jnp.float32) * (
                    1.0 / np.sqrt(4 * 4 * cin)
                )
                b = jax.random.normal(k2, (cout,), jnp.float32) * 0.01
                layers.append((w, b, 2, 1, activ))
                cin, cout = cout, cout * 2
            # final 1x1 conv, stride 1, no padding, no activation
            key, k1, k2 = jax.random.split(key, 3)
            w = jax.random.normal(k1, (1, 1, cin, 1), jnp.float32) * (1.0 / np.sqrt(cin))
            b = jax.random.normal(k2, (1,), jnp.float32) * 0.01
            self.params.append(layers + [(w, b, 1, 0, "none")])

    def __call__(self, x_nchw):
        # PyTorch conv inputs are NCHW; convert to NHWC for the kernels.
        x = jnp.transpose(x_nchw, (0, 2, 3, 1))
        n_scales = len(self.params)
        for s, layers in enumerate(self.params):
            for (w, b, stride, padding, act) in layers:
                x = conv2d_block(x, w, b, stride, padding, act)
            # F.sigmoid happens after the loop -> fuse into the last downsample
            x = avg_pool_3x3_s2_p1(x, apply_sigmoid=(s == n_scales - 1))
        return jnp.transpose(x, (0, 3, 1, 2))  # back to NCHW


# ----------------------------------------------------------------------------
# Pure-JAX reference (lax.conv / reduce_window) for validation
# ----------------------------------------------------------------------------
def reference_forward(model, x_nchw):
    x = jnp.transpose(x_nchw, (0, 2, 3, 1))
    for layers in model.params:
        for (w, b, stride, padding, act) in layers:
            xp = jnp.pad(x, ((0, 0), (padding, padding), (padding, padding), (0, 0)))
            y = lax.conv_general_dilated(
                xp, w, (stride, stride), "VALID",
                dimension_numbers=("NHWC", "HWIO", "NHWC"),
            ) + b
            if act == "lrelu":
                y = jnp.where(y >= 0, y, 0.2 * y)
            elif act == "relu":
                y = jnp.maximum(y, 0.0)
            elif act == "tanh":
                y = jnp.tanh(y)
            x = y
        pads = ((0, 0), (1, 1), (1, 1), (0, 0))
        ssum = lax.reduce_window(x, 0.0, lax.add, (1, 3, 3, 1), (1, 2, 2, 1), pads)
        cnt = lax.reduce_window(jnp.ones_like(x), 0.0, lax.add, (1, 3, 3, 1), (1, 2, 2, 1), pads)
        x = ssum / cnt
    x = jax.nn.sigmoid(x)
    return jnp.transpose(x, (0, 3, 1, 2))


if __name__ == "__main__":
    key = jax.random.PRNGKey(0)
    kx, kp = jax.random.split(key)

    # NOTE: the PyTorch forward only type-checks for num_scales > 1 when
    # input_dim == 1 (each sub-net outputs 1 channel); we use num_scales=1.
    x = jax.random.normal(kx, (2, 4, 16, 16), jnp.float32)  # NCHW like PyTorch

    model = DiscriminatorPallas(
        input_dim=4, n_layer=2, dim=8, activ="lrelu", pad="zero",
        num_scales=1, key=kp,
    )

    fwd = jax.jit(model.__call__)
    out = jax.block_until_ready(fwd(x))

    ref = reference_forward(model, x)
    # bf16 matmul inputs (f32 accumulation) -> relaxed tolerance vs f32 reference
    np.testing.assert_allclose(np.asarray(out), np.asarray(ref), rtol=2e-2, atol=2e-2)
    assert out.shape == (2, 1, 2, 2)

    print("KERNEL_OK")
</pallas_src>

<mosaic_0001>
module attributes {stable_mosaic.version = 11 : i64} {
  func.func @_matmul_bias_act_kernel(%arg0: i32, %arg1: i32, %arg2: i32, %arg3: memref<64x128xbf16, #tpu.memory_space<vmem>>, %arg4: memref<128x128xbf16, #tpu.memory_space<vmem>>, %arg5: memref<1x128xf32, #tpu.memory_space<vmem>>, %arg6: memref<64x128xf32, #tpu.memory_space<vmem>>, %arg7: memref<64x128xf32, #tpu.memory_space<vmem>>) attributes {dimension_semantics = [#tpu.dimension_semantics<parallel>, #tpu.dimension_semantics<parallel>, #tpu.dimension_semantics<arbitrary>], iteration_bounds = array<i64: 2, 1, 1>, scalar_prefetch = 0 : i64, scratch_operands = 1 : i64, tpu.core_type = #tpu.core_type<tc>, window_params = [{transform_indices = @transform_0, window_bounds = array<i64: 64, 128>}, {transform_indices = @transform_1, window_bounds = array<i64: 128, 128>}, {transform_indices = @transform_2, window_bounds = array<i64: 1, 128>}, {transform_indices = @transform_3, window_bounds = array<i64: 64, 128>}]} {
    %c0_i32 = arith.constant 0 : i32
    %0 = arith.cmpi eq, %arg2, %c0_i32 : i32
    %1 = arith.extui %0 : i1 to i32
    %c0_i32_0 = arith.constant 0 : i32
    %2 = arith.cmpi ne, %1, %c0_i32_0 : i32
    scf.if %2 {
      %cst_10 = arith.constant 0.000000e+00 : f32
      %12 = vector.broadcast %cst_10 : f32 to vector<64x128xf32>
      %c0_11 = arith.constant 0 : index
      %c0_12 = arith.constant 0 : index
      %13 = vector.load %arg7[%c0_11, %c0_12] : memref<64x128xf32, #tpu.memory_space<vmem>>, vector<64x128xf32>
      tpu.vector_store %arg7[%c0_11, %c0_12], %12 {strides = array<i32>} : memref<64x128xf32, #tpu.memory_space<vmem>>, vector<64x128xf32>,
    } else {
    }
    %c0 = arith.constant 0 : index
    %c0_1 = arith.constant 0 : index
    %3 = vector.load %arg7[%c0, %c0_1] : memref<64x128xf32, #tpu.memory_space<vmem>>, vector<64x128xf32>
    %c0_2 = arith.constant 0 : index
    %c0_3 = arith.constant 0 : index
    %4 = vector.load %arg3[%c0_2, %c0_3] : memref<64x128xbf16, #tpu.memory_space<vmem>>, vector<64x128xbf16>
    %c0_4 = arith.constant 0 : index
    %c0_5 = arith.constant 0 : index
    %5 = vector.load %arg4[%c0_4, %c0_5] : memref<128x128xbf16, #tpu.memory_space<vmem>>, vector<128x128xbf16>
    %cst = arith.constant dense<0.000000e+00> : vector<64x128xf32>
    %6 = tpu.matmul %4, %5, %cst {dimension_numbers = #tpu.dot_dimension_numbers<[1], [0], [0], [1], [0, 0, 1, 1], [], []>} : vector<64x128xbf16>, vector<128x128xbf16>, vector<64x128xf32> -> vector<64x128xf32>
    %7 = arith.addf %3, %6 : vector<64x128xf32>
    %c0_6 = arith.constant 0 : index
    %c0_7 = arith.constant 0 : index
    %8 = vector.load %arg7[%c0_6, %c0_7] : memref<64x128xf32, #tpu.memory_space<vmem>>, vector<64x128xf32>
    tpu.vector_store %arg7[%c0_6, %c0_7], %7 {strides = array<i32>} : memref<64x128xf32, #tpu.memory_space<vmem>>, vector<64x128xf32>,
    %c0_i32_8 = arith.constant 0 : i32
    %9 = arith.cmpi eq, %arg2, %c0_i32_8 : i32
    %10 = arith.extui %9 : i1 to i32
    %c0_i32_9 = arith.constant 0 : i32
    %11 = arith.cmpi ne, %10, %c0_i32_9 : i32
    scf.if %11 {
      %c0_10 = arith.constant 0 : index
      %c0_11 = arith.constant 0 : index
      %12 = vector.load %arg7[%c0_10, %c0_11] : memref<64x128xf32, #tpu.memory_space<vmem>>, vector<64x128xf32>
      %c0_12 = arith.constant 0 : index
      %c0_13 = arith.constant 0 : index
      %13 = vector.load %arg5[%c0_12, %c0_13] : memref<1x128xf32, #tpu.memory_space<vmem>>, vector<1x128xf32>
      %14 = vector.broadcast %13 : vector<1x128xf32> to vector<64x128xf32>
      %15 = arith.addf %12, %14 : vector<64x128xf32>
      %cst_14 = arith.constant 0.000000e+00 : f32
      %16 = vector.broadcast %cst_14 : f32 to vector<64x128xf32>
      %17 = arith.cmpf oge, %15, %16 : vector<64x128xf32>
      %cst_15 = arith.constant 2.000000e-01 : f32
      %18 = vector.broadcast %cst_15 : f32 to vector<64x128xf32>
      %19 = arith.mulf %18, %15 : vector<64x128xf32>
      %20 = arith.select %17, %15, %19 : vector<64x128xi1>, vector<64x128xf32>
      %c0_16 = arith.constant 0 : index
      %c0_17 = arith.constant 0 : index
      %21 = vector.load %arg6[%c0_16, %c0_17] : memref<64x128xf32, #tpu.memory_space<vmem>>, vector<64x128xf32>
      tpu.vector_store %arg6[%c0_16, %c0_17], %20 {strides = array<i32>} : memref<64x128xf32, #tpu.memory_space<vmem>>, vector<64x128xf32>,
    } else {
    }
    return
  }
  func.func @transform_0(%arg0: i32, %arg1: i32, %arg2: i32) -> (i32, i32) {
    %c0_i32 = arith.constant 0 : i32
    return %arg0, %arg2 : i32, i32
  }
  func.func @transform_1(%arg0: i32, %arg1: i32, %arg2: i32) -> (i32, i32) {
    %c0_i32 = arith.constant 0 : i32
    return %arg2, %arg1 : i32, i32
  }
  func.func @transform_2(%arg0: i32, %arg1: i32, %arg2: i32) -> (i32, i32) {
    %c0_i32 = arith.constant 0 : i32
    %c0_i32_0 = arith.constant 0 : i32
    return %c0_i32, %arg1 : i32, i32
  }
  func.func @transform_3(%arg0: i32, %arg1: i32, %arg2: i32) -> (i32, i32) {
    %c0_i32 = arith.constant 0 : i32
    return %arg0, %arg1 : i32, i32
  }
}

module attributes {stable_mosaic.version = 11 : i64} {
  func.func @_matmul_bias_act_kernel(%arg0: i32, %arg1: i32, %arg2: i32, %arg3: memref<32x128xbf16, #tpu.memory_space<vmem>>, %arg4: memref<128x128xbf16, #tpu.memory_space<vmem>>, %arg5: memref<1x128xf32, #tpu.memory_space<vmem>>, %arg6: memref<32x128xf32, #tpu.memory_space<vmem>>, %arg7: memref<32x128xf32, #tpu.memory_space<vmem>>) attributes {dimension_semantics = [#tpu.dimension_semantics<parallel>, #tpu.dimension_semantics<parallel>, #tpu.dimension_semantics<arbitrary>], iteration_bounds = array<i64: 1, 1, 1>, scalar_prefetch = 0 : i64, scratch_operands = 1 : i64, tpu.core_type = #tpu.core_type<tc>, window_params = [{transform_indices = @transform_0, window_bounds = array<i64: 32, 128>}, {transform_indices = @transform_1, window_bounds = array<i64: 128, 128>}, {transform_indices = @transform_2, window_bounds = array<i64: 1, 128>}, {transform_indices = @transform_3, window_bounds = array<i64: 32, 128>}]} {
    %c0_i32 = arith.constant 0 : i32
    %0 = arith.cmpi eq, %arg2, %c0_i32 : i32
    %1 = arith.extui %0 : i1 to i32
    %c0_i32_0 = arith.constant 0 : i32
    %2 = arith.cmpi ne, %1, %c0_i32_0 : i32
    scf.if %2 {
      %cst_10 = arith.constant 0.000000e+00 : f32
      %12 = vector.broadcast %cst_10 : f32 to vector<32x128xf32>
      %c0_11 = arith.constant 0 : index
      %c0_12 = arith.constant 0 : index
      %13 = vector.load %arg7[%c0_11, %c0_12] : memref<32x128xf32, #tpu.memory_space<vmem>>, vector<32x128xf32>
      tpu.vector_store %arg7[%c0_11, %c0_12], %12 {strides = array<i32>} : memref<32x128xf32, #tpu.memory_space<vmem>>, vector<32x128xf32>,
    } else {
    }
    %c0 = arith.constant 0 : index
    %c0_1 = arith.constant 0 : index
    %3 = vector.load %arg7[%c0, %c0_1] : memref<32x128xf32, #tpu.memory_space<vmem>>, vector<32x128xf32>
    %c0_2 = arith.constant 0 : index
    %c0_3 = arith.constant 0 : index
    %4 = vector.load %arg3[%c0_2, %c0_3] : memref<32x128xbf16, #tpu.memory_space<vmem>>, vector<32x128xbf16>
    %c0_4 = arith.constant 0 : index
    %c0_5 = arith.constant 0 : index
    %5 = vector.load %arg4[%c0_4, %c0_5] : memref<128x128xbf16, #tpu.memory_space<vmem>>, vector<128x128xbf16>
    %cst = arith.constant dense<0.000000e+00> : vector<32x128xf32>
    %6 = tpu.matmul %4, %5, %cst {dimension_numbers = #tpu.dot_dimension_numbers<[1], [0], [0], [1], [0, 0, 1, 1], [], []>} : vector<32x128xbf16>, vector<128x128xbf16>, vector<32x128xf32> -> vector<32x128xf32>
    %7 = arith.addf %3, %6 : vector<32x128xf32>
    %c0_6 = arith.constant 0 : index
    %c0_7 = arith.constant 0 : index
    %8 = vector.load %arg7[%c0_6, %c0_7] : memref<32x128xf32, #tpu.memory_space<vmem>>, vector<32x128xf32>
    tpu.vector_store %arg7[%c0_6, %c0_7], %7 {strides = array<i32>} : memref<32x128xf32, #tpu.memory_space<vmem>>, vector<32x128xf32>,
    %c0_i32_8 = arith.constant 0 : i32
    %9 = arith.cmpi eq, %arg2, %c0_i32_8 : i32
    %10 = arith.extui %9 : i1 to i32
    %c0_i32_9 = arith.constant 0 : i32
    %11 = arith.cmpi ne, %10, %c0_i32_9 : i32
    scf.if %11 {
      %c0_10 = arith.constant 0 : index
      %c0_11 = arith.constant 0 : index
      %12 = vector.load %arg7[%c0_10, %c0_11] : memref<32x128xf32, #tpu.memory_space<vmem>>, vector<32x128xf32>
      %c0_12 = arith.constant 0 : index
      %c0_13 = arith.constant 0 : index
      %13 = vector.load %arg5[%c0_12, %c0_13] : memref<1x128xf32, #tpu.memory_space<vmem>>, vector<1x128xf32>
      %14 = vector.broadcast %13 : vector<1x128xf32> to vector<32x128xf32>
      %15 = arith.addf %12, %14 : vector<32x128xf32>
      %c0_14 = arith.constant 0 : index
      %c0_15 = arith.constant 0 : index
      %16 = vector.load %arg6[%c0_14, %c0_15] : memref<32x128xf32, #tpu.memory_space<vmem>>, vector<32x128xf32>
      tpu.vector_store %arg6[%c0_14, %c0_15], %15 {strides = array<i32>} : memref<32x128xf32, #tpu.memory_space<vmem>>, vector<32x128xf32>,
    } else {
    }
    return
  }
  func.func @transform_0(%arg0: i32, %arg1: i32, %arg2: i32) -> (i32, i32) {
    %c0_i32 = arith.constant 0 : i32
    return %arg0, %arg2 : i32, i32
  }
  func.func @transform_1(%arg0: i32, %arg1: i32, %arg2: i32) -> (i32, i32) {
    %c0_i32 = arith.constant 0 : i32
    return %arg2, %arg1 : i32, i32
  }
  func.func @transform_2(%arg0: i32, %arg1: i32, %arg2: i32) -> (i32, i32) {
    %c0_i32 = arith.constant 0 : i32
    %c0_i32_0 = arith.constant 0 : i32
    return %c0_i32, %arg1 : i32, i32
  }
  func.func @transform_3(%arg0: i32, %arg1: i32, %arg2: i32) -> (i32, i32) {
    %c0_i32 = arith.constant 0 : i32
    return %arg0, %arg1 : i32, i32
  }
}

module attributes {stable_mosaic.version = 11 : i64} {
  func.func @_matmul_bias_act_kernel(%arg0: i32, %arg1: i32, %arg2: i32, %arg3: memref<32x128xbf16, #tpu.memory_space<vmem>>, %arg4: memref<128x128xbf16, #tpu.memory_space<vmem>>, %arg5: memref<1x128xf32, #tpu.memory_space<vmem>>, %arg6: memref<32x128xf32, #tpu.memory_space<vmem>>, %arg7: memref<32x128xf32, #tpu.memory_space<vmem>>) attributes {dimension_semantics = [#tpu.dimension_semantics<parallel>, #tpu.dimension_semantics<parallel>, #tpu.dimension_semantics<arbitrary>], iteration_bounds = array<i64: 1, 1, 1>, scalar_prefetch = 0 : i64, scratch_operands = 1 : i64, tpu.core_type = #tpu.core_type<tc>, window_params = [{transform_indices = @transform_0, window_bounds = array<i64: 32, 128>}, {transform_indices = @transform_1, window_bounds = array<i64: 128, 128>}, {transform_indices = @transform_2, window_bounds = array<i64: 1, 128>}, {transform_indices = @transform_3, window_bounds = array<i64: 32, 128>}]} {
    %c0_i32 = arith.constant 0 : i32
    %0 = arith.cmpi eq, %arg2, %c0_i32 : i32
    %1 = arith.extui %0 : i1 to i32
    %c0_i32_0 = arith.constant 0 : i32
    %2 = arith.cmpi ne, %1, %c0_i32_0 : i32
    scf.if %2 {
      %cst_10 = arith.constant 0.000000e+00 : f32
      %12 = vector.broadcast %cst_10 : f32 to vector<32x128xf32>
      %c0_11 = arith.constant 0 : index
      %c0_12 = arith.constant 0 : index
      %13 = vector.load %arg7[%c0_11, %c0_12] : memref<32x128xf32, #tpu.memory_space<vmem>>, vector<32x128xf32>
      tpu.vector_store %arg7[%c0_11, %c0_12], %12 {strides = array<i32>} : memref<32x128xf32, #tpu.memory_space<vmem>>, vector<32x128xf32>,
    } else {
    }
    %c0 = arith.constant 0 : index
    %c0_1 = arith.constant 0 : index
    %3 = vector.load %arg7[%c0, %c0_1] : memref<32x128xf32, #tpu.memory_space<vmem>>, vector<32x128xf32>
    %c0_2 = arith.constant 0 : index
    %c0_3 = arith.constant 0 : index
    %4 = vector.load %arg3[%c0_2, %c0_3] : memref<32x128xbf16, #tpu.memory_space<vmem>>, vector<32x128xbf16>
    %c0_4 = arith.constant 0 : index
    %c0_5 = arith.constant 0 : index
    %5 = vector.load %arg4[%c0_4, %c0_5] : memref<128x128xbf16, #tpu.memory_space<vmem>>, vector<128x128xbf16>
    %cst = arith.constant dense<0.000000e+00> : vector<32x128xf32>
    %6 = tpu.matmul %4, %5, %cst {dimension_numbers = #tpu.dot_dimension_numbers<[1], [0], [0], [1], [0, 0, 1, 1], [], []>} : vector<32x128xbf16>, vector<128x128xbf16>, vector<32x128xf32> -> vector<32x128xf32>
    %7 = arith.addf %3, %6 : vector<32x128xf32>
    %c0_6 = arith.constant 0 : index
    %c0_7 = arith.constant 0 : index
    %8 = vector.load %arg7[%c0_6, %c0_7] : memref<32x128xf32, #tpu.memory_space<vmem>>, vector<32x128xf32>
    tpu.vector_store %arg7[%c0_6, %c0_7], %7 {strides = array<i32>} : memref<32x128xf32, #tpu.memory_space<vmem>>, vector<32x128xf32>,
    %c0_i32_8 = arith.constant 0 : i32
    %9 = arith.cmpi eq, %arg2, %c0_i32_8 : i32
    %10 = arith.extui %9 : i1 to i32
    %c0_i32_9 = arith.constant 0 : i32
    %11 = arith.cmpi ne, %10, %c0_i32_9 : i32
    scf.if %11 {
      %c0_10 = arith.constant 0 : index
      %c0_11 = arith.constant 0 : index
      %12 = vector.load %arg7[%c0_10, %c0_11] : memref<32x128xf32, #tpu.memory_space<vmem>>, vector<32x128xf32>
      %c0_12 = arith.constant 0 : index
      %c0_13 = arith.constant 0 : index
      %13 = vector.load %arg5[%c0_12, %c0_13] : memref<1x128xf32, #tpu.memory_space<vmem>>, vector<1x128xf32>
      %14 = vector.broadcast %13 : vector<1x128xf32> to vector<32x128xf32>
      %15 = arith.addf %12, %14 : vector<32x128xf32>
      %cst_14 = arith.constant 0.000000e+00 : f32
      %16 = vector.broadcast %cst_14 : f32 to vector<32x128xf32>
      %17 = arith.cmpf oge, %15, %16 : vector<32x128xf32>
      %cst_15 = arith.constant 2.000000e-01 : f32
      %18 = vector.broadcast %cst_15 : f32 to vector<32x128xf32>
      %19 = arith.mulf %18, %15 : vector<32x128xf32>
      %20 = arith.select %17, %15, %19 : vector<32x128xi1>, vector<32x128xf32>
      %c0_16 = arith.constant 0 : index
      %c0_17 = arith.constant 0 : index
      %21 = vector.load %arg6[%c0_16, %c0_17] : memref<32x128xf32, #tpu.memory_space<vmem>>, vector<32x128xf32>
      tpu.vector_store %arg6[%c0_16, %c0_17], %20 {strides = array<i32>} : memref<32x128xf32, #tpu.memory_space<vmem>>, vector<32x128xf32>,
    } else {
    }
    return
  }
  func.func @transform_0(%arg0: i32, %arg1: i32, %arg2: i32) -> (i32, i32) {
    %c0_i32 = arith.constant 0 : i32
    return %arg0, %arg2 : i32, i32
  }
  func.func @transform_1(%arg0: i32, %arg1: i32, %arg2: i32) -> (i32, i32) {
    %c0_i32 = arith.constant 0 : i32
    return %arg2, %arg1 : i32, i32
  }
  func.func @transform_2(%arg0: i32, %arg1: i32, %arg2: i32) -> (i32, i32) {
    %c0_i32 = arith.constant 0 : i32
    %c0_i32_0 = arith.constant 0 : i32
    return %c0_i32, %arg1 : i32, i32
  }
  func.func @transform_3(%arg0: i32, %arg1: i32, %arg2: i32) -> (i32, i32) {
    %c0_i32 = arith.constant 0 : i32
    return %arg0, %arg1 : i32, i32
  }
}

module attributes {stable_mosaic.version = 11 : i64} {
  func.func @_avgpool_sigmoid_kernel(%arg0: i32, %arg1: memref<9x128xf32, #tpu.memory_space<vmem>>, %arg2: memref<1x128xf32, #tpu.memory_space<vmem>>, %arg3: memref<1x128xf32, #tpu.memory_space<vmem>>) attributes {dimension_semantics = [#tpu.dimension_semantics<parallel>], iteration_bounds = array<i64: 1>, scalar_prefetch = 0 : i64, scratch_operands = 0 : i64, tpu.core_type = #tpu.core_type<tc>, window_params = [{transform_indices = @transform_0, window_bounds = array<i64: 9, 128>}, {transform_indices = @transform_1, window_bounds = array<i64: 1, 128>}, {transform_indices = @transform_2, window_bounds = array<i64: 1, 128>}]} {
    %c0 = arith.constant 0 : index
    %c0_0 = arith.constant 0 : index
    %0 = vector.load %arg1[%c0, %c0_0] : memref<9x128xf32, #tpu.memory_space<vmem>>, vector<9x128xf32>
    %cst = arith.constant dense<0.000000e+00> : vector<128xf32>
    %1 = vector.multi_reduction <add>, %0, %cst [0] : vector<9x128xf32> to vector<128xf32>
    %2 = vector.shape_cast %1 : vector<128xf32> to vector<1x128xf32>
    %c0_1 = arith.constant 0 : index
    %c0_2 = arith.constant 0 : index
    %3 = vector.load %arg2[%c0_1, %c0_2] : memref<1x128xf32, #tpu.memory_space<vmem>>, vector<1x128xf32>
    %4 = arith.mulf %2, %3 : vector<1x128xf32>
    %cst_3 = arith.constant 5.000000e-01 : f32
    %5 = vector.broadcast %cst_3 : f32 to vector<1x128xf32>
    %6 = arith.mulf %5, %4 : vector<1x128xf32>
    %7 = math.tanh %6 : vector<1x128xf32>
    %cst_4 = arith.constant 1.000000e+00 : f32
    %8 = vector.broadcast %cst_4 : f32 to vector<1x128xf32>
    %9 = arith.addf %7, %8 : vector<1x128xf32>
    %cst_5 = arith.constant 5.000000e-01 : f32
    %10 = vector.broadcast %cst_5 : f32 to vector<1x128xf32>
    %11 = arith.mulf %10, %9 : vector<1x128xf32>
    %c0_6 = arith.constant 0 : index
    %c0_7 = arith.constant 0 : index
    %12 = vector.load %arg3[%c0_6, %c0_7] : memref<1x128xf32, #tpu.memory_space<vmem>>, vector<1x128xf32>
    tpu.vector_store %arg3[%c0_6, %c0_7], %11 {strides = array<i32>} : memref<1x128xf32, #tpu.memory_space<vmem>>, vector<1x128xf32>,
    return
  }
  func.func @transform_0(%arg0: i32) -> (i32, i32) {
    %c0_i32 = arith.constant 0 : i32
    %c0_i32_0 = arith.constant 0 : i32
    return %c0_i32, %arg0 : i32, i32
  }
  func.func @transform_1(%arg0: i32) -> (i32, i32) {
    %c0_i32 = arith.constant 0 : i32
    %c0_i32_0 = arith.constant 0 : i32
    return %c0_i32, %arg0 : i32, i32
  }
  func.func @transform_2(%arg0: i32) -> (i32, i32) {
    %c0_i32 = arith.constant 0 : i32
    %c0_i32_0 = arith.constant 0 : i32
    return %c0_i32, %arg0 : i32, i32
  }
}

</mosaic_0001>

<llo_original>
// kernel: a_call__.4
$region0: #{a_call__.4}
  #allocation0 [shape = 'u32[]', space=smem, size = 0x4, offset = 0x4, fixed_abs, tag = 'smem constant byte address 0x4 - core index']
  #allocation1 [shape = 'u32[144,128]{1,0:T(1,128)}', space=vmem, size = 0x12000, scoped, tag = 'internal scratch']
  #allocation2 [shape = 'f32[64,128]{1,0:T(8,128)}', space=vmem, size = 0x8000, scoped, tag = 'scratch operand']
  %s0 = inlined_call_operand.vmem [shape: bf16[128,128], index: 0, kind: input, shape index: {}]
  %s1 = inlined_call_operand.vmem [shape: bf16[128,128], index: 1, kind: input, shape index: {}]
  %s2 = inlined_call_operand.vmem [shape: f32[1,128], index: 2, kind: input, shape index: {}]
  %s3 = inlined_call_operand.vmem [shape: f32[128,128], index: 3, kind: output, shape index: {}]
  %s4 = sld [smem:[#allocation0]]
  $region53: #{a_call__.4} parent=0
    _
  %s6 = ssub.s32 1, %s4
  %s7 = scalar_select 0, %s6, %s4
  loop: start=0, step=1, limit=4
  $region2: #{a_call__.4} parent=0 // loop_pre_header
    _
  $region3: #{a_call__.4} parent=0 // loop_header
    %s9 = sphi 0, %s13
    %p10 = scmp.ge.s32.totalorder %s9, 4
    %s16 = sphi 0, %s35
    %s17 = sphi 0, %s31
    %s18 = sphi 0, %s27
    %s19 = sphi 0, %s16
    %s20 = sphi 0, %s17
    %s21 = sphi 0, %s18
    %s22 = sphi 0, %s19
    %s23 = sphi 0, %s20
    %s24 = sphi 0, %s21
    %s40 = sphi 0, %s42
    %s43 = sphi 0, %s40
    %s44 = sphi 0, %s43
    %s60 = sphi 0, %s44
    %s68 = sphi 0, %s70
    %s71 = sphi 0, %s68
    %s72 = sphi 0, %s71
    %s88 = sphi 0, %s72
    %s94 = sphi 0, %s96
    %s97 = sphi 0, %s94
    %s98 = sphi 0, %s97
    %s114 = sphi 0, %s98
    %s122 = sphi 0, %s124
    %s125 = sphi 0, %s122
    %s126 = sphi 0, %s125
    %s142 = sphi 0, %s126
  $region4: #{a_call__.4} parent=0 // loop_header_branch
    %12 = sbr.rel (%p10) target = $region8
  $region5: #{a_call__.4} parent=0 // loop_body
    %s14 = ssub.s32 %s9, 1
    %s15 = ssub.s32 %s9, 2
    %s25 = sadd.s32 1, %s18
    %p26 = scmp.ge.s32.totalorder %s25, 1
    %s27 = scalar_select %p26, 0, %s25
    %s28 = sadd.s32 1, %s17
    %s29 = scalar_select %p26, %s28, %s17
    %p30 = scmp.ge.s32.totalorder %s29, 1
    %s31 = scalar_select %p30, 0, %s29
    %s32 = sadd.s32 1, %s16
    %s33 = scalar_select %p30, %s32, %s16
    %p34 = scmp.ge.s32.totalorder %s33, 2
    %s35 = scalar_select %p34, 0, %s33
    %s36 = ssub.s32 %s16, %s35
    %s37 = ssub.s32 %s18, %s27
    %s38 = sor.u32 %s36, %s37
    %p39 = scmp.eq.s32.totalorder %s38, 0
    %s41 = sadd.s32 %s40, 1
    %s42 = scalar_select %p39, %s40, %s41
    %p45 = pneg %p39
    %p46 = scmp.eq.s32.totalorder %s9, 1
    %p47 = por %p45, %p46
    %p48 = scmp.ne.s32.totalorder %s40, %s43
    %p49 = scmp.eq.s32.totalorder %s9, 0
    %p50 = por %p48, %p49
    %p51 = scmp.ne.s32.totalorder %s40, %s43
    %p52 = scmp.eq.s32.totalorder %s14, 1
    %p53 = por %p51, %p52
    %p54 = scmp.ne.s32.totalorder %s43, %s44
    %p55 = scmp.eq.s32.totalorder %s14, 0
    %p56 = por %p54, %p55
    %p57 = scmp.ne.s32.totalorder %s43, %s44
    %p58 = scmp.eq.s32.totalorder %s15, 1
    %p59 = por %p57, %p58
    %p61 = scmp.ne.s32.totalorder %s44, %s60
    %p62 = scmp.eq.s32.totalorder %s15, 0
    %p63 = por %p61, %p62
    %s64 = ssub.s32 %s18, %s27
    %s65 = ssub.s32 %s17, %s31
    %s66 = sor.u32 %s64, %s65
    %p67 = scmp.eq.s32.totalorder %s66, 0
    %s69 = sadd.s32 %s68, 1
    %s70 = scalar_select %p67, %s68, %s69
    %p73 = pneg %p67
    %p74 = scmp.eq.s32.totalorder %s9, 1
    %p75 = por %p73, %p74
    %p76 = scmp.ne.s32.totalorder %s68, %s71
    %p77 = scmp.eq.s32.totalorder %s9, 0
    %p78 = por %p76, %p77
    %p79 = scmp.ne.s32.totalorder %s68, %s71
    %p80 = scmp.eq.s32.totalorder %s14, 1
    %p81 = por %p79, %p80
    %p82 = scmp.ne.s32.totalorder %s71, %s72
    %p83 = scmp.eq.s32.totalorder %s14, 0
    %p84 = por %p82, %p83
    %p85 = scmp.ne.s32.totalorder %s71, %s72
    %p86 = scmp.eq.s32.totalorder %s15, 1
    %p87 = por %p85, %p86
    %p89 = scmp.ne.s32.totalorder %s72, %s88
    %p90 = scmp.eq.s32.totalorder %s15, 0
    %p91 = por %p89, %p90
    %s92 = ssub.s32 %s17, %s31
    %p93 = scmp.eq.s32.totalorder %s92, 0
    %s95 = sadd.s32 %s94, 1
    %s96 = scalar_select %p93, %s94, %s95
    %p99 = pneg %p93
    %p100 = scmp.eq.s32.totalorder %s9, 1
    %p101 = por %p99, %p100
    %p102 = scmp.ne.s32.totalorder %s94, %s97
    %p103 = scmp.eq.s32.totalorder %s9, 0
    %p104 = por %p102, %p103
    %p105 = scmp.ne.s32.totalorder %s94, %s97
    %p106 = scmp.eq.s32.totalorder %s14, 1
    %p107 = por %p105, %p106
    %p108 = scmp.ne.s32.totalorder %s97, %s98
    %p109 = scmp.eq.s32.totalorder %s14, 0
    %p110 = por %p108, %p109
    %p111 = scmp.ne.s32.totalorder %s97, %s98
    %p112 = scmp.eq.s32.totalorder %s15, 1
    %p113 = por %p111, %p112
    %p115 = scmp.ne.s32.totalorder %s98, %s114
    %p116 = scmp.eq.s32.totalorder %s15, 0
    %p117 = por %p115, %p116
    %s118 = ssub.s32 %s16, %s35
    %s119 = ssub.s32 %s17, %s31
    %s120 = sor.u32 %s118, %s119
    %p121 = scmp.eq.s32.totalorder %s120, 0
    %s123 = sadd.s32 %s122, 1
    %s124 = scalar_select %p121, %s122, %s123
    %p127 = pneg %p121
    %p128 = scmp.eq.s32.totalorder %s9, 1
    %p129 = por %p127, %p128
    %p130 = scmp.ne.s32.totalorder %s122, %s125
    %p131 = scmp.eq.s32.totalorder %s9, 0
    %p132 = por %p130, %p131
    %p133 = scmp.ne.s32.totalorder %s122, %s125
    %p134 = scmp.eq.s32.totalorder %s14, 1
    %p135 = por %p133, %p134
    %p136 = scmp.ne.s32.totalorder %s125, %s126
    %p137 = scmp.eq.s32.totalorder %s14, 0
    %p138 = por %p136, %p137
    %p139 = scmp.ne.s32.totalorder %s125, %s126
    %p140 = scmp.eq.s32.totalorder %s15, 1
    %p141 = por %p139, %p140
    %p143 = scmp.ne.s32.totalorder %s126, %s142
    %p144 = scmp.eq.s32.totalorder %s15, 0
    %p145 = por %p143, %p144
    %p146 = scmp.le.s32.totalorder 1, %s9
    %p147 = scmp.lt.s32.totalorder %s9, 3
    %p148 = pnand %p146, %p147
    %p149 = pneg %p148
    // Predicated region
    $region9: #{a_call__.4} parent=5 // pred_check
      _
    $region10: #{a_call__.4} parent=5 // pred_check_branch
      %151 = sbr.rel (%p148) target = $region12
    $region11: #{a_call__.4} parent=5 // pred_region
      %s152 = ssub.s32 %s9, 1
      // Predicated region
      $region13: #{a_call__.4} parent=11 // pred_check
        %p153 = pneg %p84
      $region14: #{a_call__.4} parent=11 // pred_check_branch
        %155 = sbr.rel (%p153) target = $region16
      $region15: #{a_call__.4} parent=11 // pred_region
        %s156 = smul.u32 16, %s21
        %p157 = scmp.lt.s32.totalorder %s156, 15
        %s158 = scalar_select %p157, %s156, 15
        %p159 = scmp.lt.s32.totalorder %s20, 0
        %s160 = scalar_select %p159, %s20, 0
        %s161 = sadd.s32 %s160, %s158
        %s162 = smul.addr %s161, 4
        %s163 = scalar_lea.vmem %s1, %s162
        %s164 = smul.u32 16, %s21
      $region16: #{a_call__.4} parent=11 // pred_fallthru
        _
      // Predicated region
      $region17: #{a_call__.4} parent=11 // pred_check
        %p165 = pneg %p110
      $region18: #{a_call__.4} parent=11 // pred_check_branch
        %167 = sbr.rel (%p165) target = $region20
      $region19: #{a_call__.4} parent=11 // pred_region
        %p168 = scmp.lt.s32.totalorder %s20, 0
        %s169 = scalar_select %p168, %s20, 0
        %s170 = scalar_lea.vmem %s2, %s169
      $region20: #{a_call__.4} parent=11 // pred_fallthru
        _
    $region12: #{a_call__.4} parent=5 // pred_fallthru
      _
    %p171 = scmp.lt.s32.totalorder %s9, 2
    // Predicated region
    $region21: #{a_call__.4} parent=5 // pred_check
      %p172 = pneg %p171
    $region22: #{a_call__.4} parent=5 // pred_check_branch
      %174 = sbr.rel (%p172) target = $region24
    $region23: #{a_call__.4} parent=5 // pred_region
      // Predicated region
      $region25: #{a_call__.4} parent=23 // pred_check
        %p175 = pneg %p50
      $region26: #{a_call__.4} parent=23 // pred_check_branch
        %177 = sbr.rel (%p175) target = $region28
      $region27: #{a_call__.4} parent=23 // pred_region
        %s178 = smul.u32 8, %s16
        %p179 = scmp.lt.s32.totalorder %s178, 15
        %s180 = scalar_select %p179, %s178, 15
        %p181 = scmp.lt.s32.totalorder %s18, 0
        %s182 = scalar_select %p181, %s18, 0
        %s183 = sadd.s32 %s182, %s180
        %s184 = smul.addr %s183, 4
        %s185 = scalar_lea.vmem %s0, %s184
        %s186 = smul.u32 8, %s16
      $region28: #{a_call__.4} parent=23 // pred_fallthru
        _
    $region24: #{a_call__.4} parent=5 // pred_fallthru
      _
    %p187 = scmp.le.s32.totalorder 1, %s9
    %p188 = scmp.lt.s32.totalorder %s9, 3
    %p189 = pnand %p187, %p188
    %p190 = pneg %p189
    // Predicated region
    $region29: #{a_call__.4} parent=5 // pred_check
      _
    $region30: #{a_call__.4} parent=5 // pred_check_branch
      %192 = sbr.rel (%p189) target = $region32
    $region31: #{a_call__.4} parent=5 // pred_region
      %s193 = ssub.s32 %s9, 1
      %s194 = smul.u32 8, %s19
      %p195 = scmp.lt.s32.totalorder %s194, 15
      %s196 = scalar_select %p195, %s194, 15
      %p197 = scmp.lt.s32.totalorder %s21, 0
      %s198 = scalar_select %p197, %s21, 0
      %s199 = sadd.s32 %s198, %s196
      %s200 = smul.addr %s199, 4
      %s201 = scalar_lea.vmem %s0, %s200
      %p202 = pneg %p56
      %p203 = pneg %p53
      %s204 = smul.u32 16, %s21
      %p205 = scmp.lt.s32.totalorder %s204, 15
      %s206 = scalar_select %p205, %s204, 15
      %p207 = scmp.lt.s32.totalorder %s20, 0
      %s208 = scalar_select %p207, %s20, 0
      %s209 = sadd.s32 %s208, %s206
      %s210 = smul.addr %s209, 4
      %s211 = scalar_lea.vmem %s1, %s210
      %p212 = pneg %p84
      %p213 = pneg %p81
      %p214 = scmp.lt.s32.totalorder %s20, 0
      %s215 = scalar_select %p214, %s20, 0
      %s216 = scalar_lea.vmem %s2, %s215
      %p217 = pneg %p110
      %p218 = pneg %p107
      %p219 = pneg %p138
      %p220 = pneg %p135
      %s221 = smul.u32 8, %s19
      %p222 = scmp.lt.s32.totalorder %s221, 15
      %s223 = scalar_select %p222, %s221, 15
      %p224 = scmp.lt.s32.totalorder %s20, 0
      %s225 = scalar_select %p224, %s20, 0
      %s226 = sadd.s32 %s225, %s223
      %s227 = smul.addr %s226, 8
      %s228 = scalar_lea.vmem %s3, %s227
      %s229 = smul.u32 8, %s19
      %p230 = scmp.lt.s32.totalorder %s229, 15
      %s231 = scalar_select %p230, %s229, 15
      %p232 = scmp.lt.s32.totalorder %s21, 0
      %s233 = scalar_select %p232, %s21, 0
      %s234 = sadd.s32 %s233, %s231
      %s235 = smul.addr %s234, 4
      %s236 = scalar_lea.vmem %s0, %s235
      %s237 = smul.u32 8, %s19
      %s238 = smul.u32 16, %s21
      %p239 = scmp.lt.s32.totalorder %s238, 15
      %s240 = scalar_select %p239, %s238, 15
      %p241 = scmp.lt.s32.totalorder %s20, 0
      %s242 = scalar_select %p241, %s20, 0
      %s243 = sadd.s32 %s242, %s240
      %s244 = smul.addr %s243, 4
      %s245 = scalar_lea.vmem %s1, %s244
      %s246 = smul.u32 16, %s21
      %p247 = scmp.lt.s32.totalorder %s20, 0
      %s248 = scalar_select %p247, %s20, 0
      %s249 = scalar_lea.vmem %s2, %s248
      %s250 = smul.u32 8, %s19
      %p251 = scmp.lt.s32.totalorder %s250, 15
      %s252 = scalar_select %p251, %s250, 15
      %p253 = scmp.lt.s32.totalorder %s20, 0
      %s254 = scalar_select %p253, %s20, 0
      %s255 = sadd.s32 %s254, %s252
      %s256 = smul.addr %s255, 8
      %s257 = scalar_lea.vmem %s3, %s256
      %s258 = smul.u32 8, %s19
      %p260 = scmp.eq.s32.totalorder %s21, 0
      // Predicated region
      $region33: #{a_call__.4} parent=31 // pred_check
        %p261 = pneg %p260
      $region34: #{a_call__.4} parent=31 // pred_check_branch
        %263 = sbr.rel (%p261) target = $region36
      $region35: #{a_call__.4} parent=31 // pred_region
        %264 = vst [vmem:[#allocation2] sm:$0xff] 0.0
        %265 = vst [vmem:[#allocation2 + $0x8] sm:$0xff] 0.0
        %266 = vst [vmem:[#allocation2 + $0x10] sm:$0xff] 0.0
        %267 = vst [vmem:[#allocation2 + $0x18] sm:$0xff] 0.0
        %268 = vst [vmem:[#allocation2 + $0x20] sm:$0xff] 0.0
        %269 = vst [vmem:[#allocation2 + $0x28] sm:$0xff] 0.0
        %270 = vst [vmem:[#allocation2 + $0x30] sm:$0xff] 0.0
        %271 = vst [vmem:[#allocation2 + $0x38] sm:$0xff] 0.0
      $region36: #{a_call__.4} parent=31 // pred_fallthru
        _
      %v272 = vld [vmem:[#allocation2] sm:$0xff]
      %v273 = vld [vmem:[#allocation2 + $0x8] sm:$0xff]
      %v274 = vld [vmem:[#allocation2 + $0x10] sm:$0xff]
      %v275 = vld [vmem:[#allocation2 + $0x18] sm:$0xff]
      %v276 = vld [vmem:[#allocation2 + $0x20] sm:$0xff]
      %v277 = vld [vmem:[#allocation2 + $0x28] sm:$0xff]
      %v278 = vld [vmem:[#allocation2 + $0x30] sm:$0xff]
      %v279 = vld [vmem:[#allocation2 + $0x38] sm:$0xff]
      %v280 = vld [vmem:[%s236] sm:$0xf]
      %v281 = vld [vmem:[%s236 + $0x4] sm:$0xf]
      %v282 = vld [vmem:[%s236 + $0x8] sm:$0xf]
      %v283 = vld [vmem:[%s236 + $0xc] sm:$0xf]
      %v284 = vld [vmem:[%s236 + $0x10] sm:$0xf]
      %v285 = vld [vmem:[%s236 + $0x14] sm:$0xf]
      %v286 = vld [vmem:[%s236 + $0x18] sm:$0xf]
      %v287 = vld [vmem:[%s236 + $0x1c] sm:$0xf]
      %v288 = vld [vmem:[%s245] sm:$0xf]
      %v289 = vld [vmem:[%s245 + $0x4] sm:$0xf]
      %v290 = vld [vmem:[%s245 + $0x8] sm:$0xf]
      %v291 = vld [vmem:[%s245 + $0xc] sm:$0xf]
      %v292 = vld [vmem:[%s245 + $0x10] sm:$0xf]
      %v293 = vld [vmem:[%s245 + $0x14] sm:$0xf]
      %v294 = vld [vmem:[%s245 + $0x18] sm:$0xf]
      %v295 = vld [vmem:[%s245 + $0x1c] sm:$0xf]
      %v296 = vld [vmem:[%s245 + $0x20] sm:$0xf]
      %v297 = vld [vmem:[%s245 + $0x24] sm:$0xf]
      %v298 = vld [vmem:[%s245 + $0x28] sm:$0xf]
      %v299 = vld [vmem:[%s245 + $0x2c] sm:$0xf]
      %v300 = vld [vmem:[%s245 + $0x30] sm:$0xf]
      %v301 = vld [vmem:[%s245 + $0x34] sm:$0xf]
      %v302 = vld [vmem:[%s245 + $0x38] sm:$0xf]
      %v303 = vld [vmem:[%s245 + $0x3c] sm:$0xf]
      %v312 = vunpack.c.l.b16 %v280
      %v313 = vunpack.c.l.b16 %v281
      %v314 = vunpack.c.l.b16 %v282
      %v315 = vunpack.c.l.b16 %v283
      %v316 = vunpack.c.l.b16 %v284
      %v317 = vunpack.c.l.b16 %v285
      %v318 = vunpack.c.l.b16 %v286
      %v319 = vunpack.c.l.b16 %v287
      %v320 = vpack.c.b16 %v313, %v312
      %v321 = vpack.c.b16 %v315, %v314
      %v322 = vpack.c.b16 %v317, %v316
      %v323 = vpack.c.b16 %v319, %v318
      %v344 = vunpack.c.l.b16 %v288
      %v345 = vunpack.c.l.b16 %v289
      %v346 = vunpack.c.l.b16 %v290
      %v347 = vunpack.c.l.b16 %v291
      %v348 = vunpack.c.l.b16 %v292
      %v349 = vunpack.c.l.b16 %v293
      %v350 = vunpack.c.l.b16 %v294
      %v351 = vunpack.c.l.b16 %v295
      %v352 = vunpack.c.l.b16 %v296
      %v353 = vunpack.c.l.b16 %v297
      %v354 = vunpack.c.l.b16 %v298
      %v355 = vunpack.c.l.b16 %v299
      %v356 = vunpack.c.l.b16 %v300
      %v357 = vunpack.c.l.b16 %v301
      %v358 = vunpack.c.l.b16 %v302
      %v359 = vunpack.c.l.b16 %v303
      %v360 = vpack.c.b16 %v345, %v344
      %v361 = vpack.c.b16 %v347, %v346
      %v362 = vpack.c.b16 %v349, %v348
      %v363 = vpack.c.b16 %v351, %v350
      %v364 = vpack.c.b16 %v353, %v352
      %v365 = vpack.c.b16 %v355, %v354
      %v366 = vpack.c.b16 %v357, %v356
      %v367 = vpack.c.b16 %v359, %v358
      %376 = vmatprep.subr.bf16.mxu0 0
      %377 = vmatpush1.bf16.msra.mxu0 %v360
      %378 = vmatprep.subr.bf16.mxu0 0
      %379 = vmatpush1.bf16.msra.mxu0 %v361
      %380 = vmatprep.subr.bf16.mxu0 0
      %381 = vmatpush1.bf16.msra.mxu0 %v362
      %382 = vmatprep.subr.bf16.mxu0 0
      %383 = vmatpush1.bf16.msra.mxu0 %v363
      %384 = vmatprep.subr.bf16.mxu0 0
      %385 = vmatpush1.bf16.msra.mxu0 %v364
      %386 = vmatprep.subr.bf16.mxu0 0
      %387 = vmatpush1.bf16.msra.mxu0 %v365
      %388 = vmatprep.subr.bf16.mxu0 0
      %389 = vmatpush1.bf16.msra.mxu0 %v366
      %390 = vmatprep.subr.bf16.mxu0 0
      %391 = vmatpush1.bf16.msra.mxu0 %v367
      %392 = vmatprep.subr.bf16.mxu0 0
      %393 = vmatpush1.bf16.msra.mxu0 0
      %394 = vmatprep.subr.bf16.mxu0 0
      %395 = vmatpush1.bf16.msra.mxu0 0
      %396 = vmatprep.subr.bf16.mxu0 0
      %397 = vmatpush1.bf16.msra.mxu0 0
      %398 = vmatprep.subr.bf16.mxu0 0
      %399 = vmatpush1.bf16.msra.mxu0 0
      %400 = vmatprep.subr.bf16.mxu0 0
      %401 = vmatpush1.bf16.msra.mxu0 0
      %402 = vmatprep.subr.bf16.mxu0 0
      %403 = vmatpush1.bf16.msra.mxu0 0
      %404 = vmatprep.subr.bf16.mxu0 0
      %405 = vmatpush1.bf16.msra.mxu0 0
      %406 = vmatprep.subr.bf16.mxu0 0
      %407 = vmatpush1.bf16.msra.mxu0 0
      %408 = vmatprep.mubr.bf16.mxu0 0
      %409 = vmatmul.mubr.bf16.gmra.mrb[0].mxu0 %v320
      %v410 = vpop.f32.mrb[0].mxu0
      %v411 = vadd.f32 0.0, %v410
      %v412 = vpop.f32.mrb[0].mxu0
      %v413 = vpop.f32.mrb[0].mxu0
      %v414 = vadd.f32 0.0, %v413
      %v415 = vpop.f32.mrb[0].mxu0
      %416 = vmatprep.mubr.bf16.mxu0 0
      %417 = vmatmul.mubr.bf16.gmra.mrb[0].mxu0 %v321
      %v418 = vpop.f32.mrb[0].mxu0
      %v419 = vadd.f32 0.0, %v418
      %v420 = vpop.f32.mrb[0].mxu0
      %v421 = vpop.f32.mrb[0].mxu0
      %v422 = vadd.f32 0.0, %v421
      %v423 = vpop.f32.mrb[0].mxu0
      %424 = vmatprep.mubr.bf16.mxu0 0
      %425 = vmatmul.mubr.bf16.gmra.mrb[0].mxu0 %v322
      %v426 = vpop.f32.mrb[0].mxu0
      %v427 = vadd.f32 0.0, %v426
      %v428 = vpop.f32.mrb[0].mxu0
      %v429 = vpop.f32.mrb[0].mxu0
      %v430 = vadd.f32 0.0, %v429
      %v431 = vpop.f32.mrb[0].mxu0
      %432 = vmatprep.mubr.bf16.mxu0 0
      %433 = vmatmul.mubr.bf16.gmra.mrb[0].mxu0 %v323
      %v434 = vpop.f32.mrb[0].mxu0
      %v435 = vadd.f32 0.0, %v434
      %v436 = vpop.f32.mrb[0].mxu0
      %v437 = vpop.f32.mrb[0].mxu0
      %v438 = vadd.f32 0.0, %v437
      %v439 = vpop.f32.mrb[0].mxu0
      %440 = vdwg.mxu0
      %v441 = vadd.f32 %v272, %v411
      %v442 = vadd.f32 %v273, %v414
      %v443 = vadd.f32 %v274, %v419
      %v444 = vadd.f32 %v275, %v422
      %v445 = vadd.f32 %v276, %v427
      %v446 = vadd.f32 %v277, %v430
      %v447 = vadd.f32 %v278, %v435
      %v448 = vadd.f32 %v279, %v438
      %449 = vst [vmem:[#allocation2] sm:$0xff] %v441
      %450 = vst [vmem:[#allocation2 + $0x8] sm:$0xff] %v442
      %451 = vst [vmem:[#allocation2 + $0x10] sm:$0xff] %v443
      %452 = vst [vmem:[#allocation2 + $0x18] sm:$0xff] %v444
      %453 = vst [vmem:[#allocation2 + $0x20] sm:$0xff] %v445
      %454 = vst [vmem:[#allocation2 + $0x28] sm:$0xff] %v446
      %455 = vst [vmem:[#allocation2 + $0x30] sm:$0xff] %v447
      %456 = vst [vmem:[#allocation2 + $0x38] sm:$0xff] %v448
      // Predicated region
      $region37: #{a_call__.4} parent=31 // pred_check
        %p457 = pneg %p260
      $region38: #{a_call__.4} parent=31 // pred_check_branch
        %459 = sbr.rel (%p457) target = $region40
      $region39: #{a_call__.4} parent=31 // pred_region
        %v460 = vld [vmem:[#allocation2] sm:$0xff]
        %v461 = vld [vmem:[#allocation2 + $0x8] sm:$0xff]
        %v462 = vld [vmem:[#allocation2 + $0x10] sm:$0xff]
        %v463 = vld [vmem:[#allocation2 + $0x18] sm:$0xff]
        %v464 = vld [vmem:[#allocation2 + $0x20] sm:$0xff]
        %v465 = vld [vmem:[#allocation2 + $0x28] sm:$0xff]
        %v466 = vld [vmem:[#allocation2 + $0x30] sm:$0xff]
        %v467 = vld [vmem:[#allocation2 + $0x38] sm:$0xff]
        %v468 = vld [vmem:[%s249] sm:$0x1]
        %v470 = vlaneseq
        %v471 = vshrl.u32 %v470, 7
        %v472 = vsub.s32 0, %v471
        %v473 = vrot.slane %v468, %v472
        %v475 = vadd.f32 %v460, %v473
        %v476 = vadd.f32 %v461, %v473
        %v477 = vadd.f32 %v462, %v473
        %v478 = vadd.f32 %v463, %v473
        %v479 = vadd.f32 %v464, %v473
        %v480 = vadd.f32 %v465, %v473
        %v481 = vadd.f32 %v466, %v473
        %v482 = vadd.f32 %v467, %v473
        %vm483 = vcmp.ge.f32.partialorder %v475, 0.0
        %vm484 = vcmp.ge.f32.partialorder %v476, 0.0
        %vm485 = vcmp.ge.f32.partialorder %v477, 0.0
        %vm486 = vcmp.ge.f32.partialorder %v478, 0.0
        %vm487 = vcmp.ge.f32.partialorder %v479, 0.0
        %vm488 = vcmp.ge.f32.partialorder %v480, 0.0
        %vm489 = vcmp.ge.f32.partialorder %v481, 0.0
        %vm490 = vcmp.ge.f32.partialorder %v482, 0.0
        %v491 = vmul.f32 %v475, 0.2
        %v492 = vmul.f32 %v476, 0.2
        %v493 = vmul.f32 %v477, 0.2
        %v494 = vmul.f32 %v478, 0.2
        %v495 = vmul.f32 %v479, 0.2
        %v496 = vmul.f32 %v480, 0.2
        %v497 = vmul.f32 %v481, 0.2
        %v498 = vmul.f32 %v482, 0.2
        %v499 = vsel %vm483, %v475, %v491
        %v500 = vsel %vm484, %v476, %v492
        %v501 = vsel %vm485, %v477, %v493
        %v502 = vsel %vm486, %v478, %v494
        %v503 = vsel %vm487, %v479, %v495
        %v504 = vsel %vm488, %v480, %v496
        %v505 = vsel %vm489, %v481, %v497
        %v506 = vsel %vm490, %v482, %v498
        %507 = vst [vmem:[%s257] sm:$0xff] %v499
        %508 = vst [vmem:[%s257 + $0x8] sm:$0xff] %v500
        %509 = vst [vmem:[%s257 + $0x10] sm:$0xff] %v501
        %510 = vst [vmem:[%s257 + $0x18] sm:$0xff] %v502
        %511 = vst [vmem:[%s257 + $0x20] sm:$0xff] %v503
        %512 = vst [vmem:[%s257 + $0x28] sm:$0xff] %v504
        %513 = vst [vmem:[%s257 + $0x30] sm:$0xff] %v505
        %514 = vst [vmem:[%s257 + $0x38] sm:$0xff] %v506
      $region40: #{a_call__.4} parent=31 // pred_fallthru
        _
      %s515 = smul.u32 8, %s19
      %p516 = scmp.lt.s32.totalorder %s515, 15
      %s517 = scalar_select %p516, %s515, 15
      %p518 = scmp.lt.s32.totalorder %s20, 0
      %s519 = scalar_select %p518, %s20, 0
      %s520 = sadd.s32 %s519, %s517
      %s521 = smul.addr %s520, 8
      %s522 = scalar_lea.vmem %s3, %s521
      // Predicated region
      $region41: #{a_call__.4} parent=31 // pred_check
        %p523 = pneg %p135
      $region42: #{a_call__.4} parent=31 // pred_check_branch
        %525 = sbr.rel (%p523) target = $region44
      $region43: #{a_call__.4} parent=31 // pred_region
        %s526 = smul.u32 8, %s19
      $region44: #{a_call__.4} parent=31 // pred_fallthru
        _
    $region32: #{a_call__.4} parent=5 // pred_fallthru
      _
    %p527 = scmp.le.s32.totalorder 2, %s9
    // Predicated region
    $region45: #{a_call__.4} parent=5 // pred_check
      %p528 = pneg %p527
    $region46: #{a_call__.4} parent=5 // pred_check_branch
      %530 = sbr.rel (%p528) target = $region48
    $region47: #{a_call__.4} parent=5 // pred_region
      %s531 = ssub.s32 %s9, 2
      // Predicated region
      $region49: #{a_call__.4} parent=47 // pred_check
        %p532 = pneg %p141
      $region50: #{a_call__.4} parent=47 // pred_check_branch
        %534 = sbr.rel (%p532) target = $region52
      $region51: #{a_call__.4} parent=47 // pred_region
        %s535 = smul.u32 8, %s22
        %p536 = scmp.lt.s32.totalorder %s535, 15
        %s537 = scalar_select %p536, %s535, 15
        %p538 = scmp.lt.s32.totalorder %s23, 0
        %s539 = scalar_select %p538, %s23, 0
        %s540 = sadd.s32 %s539, %s537
        %s541 = smul.addr %s540, 8
        %s542 = scalar_lea.vmem %s3, %s541
      $region52: #{a_call__.4} parent=47 // pred_fallthru
        _
    $region48: #{a_call__.4} parent=5 // pred_fallthru
      _
  $region6: #{a_call__.4} parent=0 // loop_footer
    %s13 = sadd.s32 1, %s9
  $region7: #{a_call__.4} parent=0 // loop_footer_branch
    %8 = sbr.rel target = $region3
  $region8: #{a_call__.4} parent=0 // loop_exit
    _

// kernel: a_call__.6
$region0: #{a_call__.6}
  #allocation0 [shape = 'u32[]', space=smem, size = 0x4, offset = 0x4, fixed_abs, tag = 'smem constant byte address 0x4 - core index']
  #allocation1 [shape = 'u32[144,128]{1,0:T(1,128)}', space=vmem, size = 0x12000, scoped, tag = 'internal scratch']
  #allocation2 [shape = 'f32[32,128]{1,0:T(8,128)}', space=vmem, size = 0x4000, scoped, tag = 'scratch operand']
  %s0 = inlined_call_operand.vmem [shape: bf16[32,128], index: 0, kind: input, shape index: {}]
  %s1 = inlined_call_operand.vmem [shape: bf16[128,128], index: 1, kind: input, shape index: {}]
  %s2 = inlined_call_operand.vmem [shape: f32[1,128], index: 2, kind: input, shape index: {}]
  %s3 = inlined_call_operand.vmem [shape: f32[32,128], index: 3, kind: output, shape index: {}]
  %s4 = sld [smem:[#allocation0]]
  $region30: #{a_call__.6} parent=0
    _
  %s6 = ssub.s32 1, %s4
  %s7 = scalar_select 0, %s6, %s4
  // Predicated region
  $region2: #{a_call__.6} parent=0 // pred_check
    _
  $region3: #{a_call__.6} parent=0 // pred_check_branch
    %9 = sbr.rel (0) target = $region5
  $region4: #{a_call__.6} parent=0 // pred_region
    _
  $region5: #{a_call__.6} parent=0 // pred_fallthru
    _
  // Predicated region
  $region6: #{a_call__.6} parent=0 // pred_check
    _
  $region7: #{a_call__.6} parent=0 // pred_check_branch
    %11 = sbr.rel (0) target = $region9
  $region8: #{a_call__.6} parent=0 // pred_region
    _
  $region9: #{a_call__.6} parent=0 // pred_fallthru
    _
  // Predicated region
  $region10: #{a_call__.6} parent=0 // pred_check
    _
  $region11: #{a_call__.6} parent=0 // pred_check_branch
    %13 = sbr.rel (0) target = $region13
  $region12: #{a_call__.6} parent=0 // pred_region
    _
  $region13: #{a_call__.6} parent=0 // pred_fallthru
    _
  %p15 = scmp.eq.s32.totalorder 0, 0
  // Predicated region
  $region14: #{a_call__.6} parent=0 // pred_check
    %p16 = pneg %p15
  $region15: #{a_call__.6} parent=0 // pred_check_branch
    %18 = sbr.rel (%p16) target = $region17
  $region16: #{a_call__.6} parent=0 // pred_region
    %19 = vst [vmem:[#allocation2] sm:$0xff] 0.0
    %20 = vst [vmem:[#allocation2 + $0x8] sm:$0xff] 0.0
    %21 = vst [vmem:[#allocation2 + $0x10] sm:$0xff] 0.0
    %22 = vst [vmem:[#allocation2 + $0x18] sm:$0xff] 0.0
  $region17: #{a_call__.6} parent=0 // pred_fallthru
    _
  %v23 = vld [vmem:[#allocation2] sm:$0xff]
  %v24 = vld [vmem:[#allocation2 + $0x8] sm:$0xff]
  %v25 = vld [vmem:[#allocation2 + $0x10] sm:$0xff]
  %v26 = vld [vmem:[#allocation2 + $0x18] sm:$0xff]
  %v27 = vld [vmem:[%s0] sm:$0xf]
  %v28 = vld [vmem:[%s0 + $0x4] sm:$0xf]
  %v29 = vld [vmem:[%s0 + $0x8] sm:$0xf]
  %v30 = vld [vmem:[%s0 + $0xc] sm:$0xf]
  %v31 = vld [vmem:[%s1] sm:$0xf]
  %v32 = vld [vmem:[%s1 + $0x4] sm:$0xf]
  %v33 = vld [vmem:[%s1 + $0x8] sm:$0xf]
  %v34 = vld [vmem:[%s1 + $0xc] sm:$0xf]
  %v35 = vld [vmem:[%s1 + $0x10] sm:$0xf]
  %v36 = vld [vmem:[%s1 + $0x14] sm:$0xf]
  %v37 = vld [vmem:[%s1 + $0x18] sm:$0xf]
  %v38 = vld [vmem:[%s1 + $0x1c] sm:$0xf]
  %v39 = vld [vmem:[%s1 + $0x20] sm:$0xf]
  %v40 = vld [vmem:[%s1 + $0x24] sm:$0xf]
  %v41 = vld [vmem:[%s1 + $0x28] sm:$0xf]
  %v42 = vld [vmem:[%s1 + $0x2c] sm:$0xf]
  %v43 = vld [vmem:[%s1 + $0x30] sm:$0xf]
  %v44 = vld [vmem:[%s1 + $0x34] sm:$0xf]
  %v45 = vld [vmem:[%s1 + $0x38] sm:$0xf]
  %v46 = vld [vmem:[%s1 + $0x3c] sm:$0xf]
  %v51 = vunpack.c.l.b16 %v27
  %v52 = vunpack.c.l.b16 %v28
  %v53 = vunpack.c.l.b16 %v29
  %v54 = vunpack.c.l.b16 %v30
  %v55 = vpack.c.b16 %v52, %v51
  %v56 = vpack.c.b16 %v54, %v53
  %v75 = vunpack.c.l.b16 %v31
  %v76 = vunpack.c.l.b16 %v32
  %v77 = vunpack.c.l.b16 %v33
  %v78 = vunpack.c.l.b16 %v34
  %v79 = vunpack.c.l.b16 %v35
  %v80 = vunpack.c.l.b16 %v36
  %v81 = vunpack.c.l.b16 %v37
  %v82 = vunpack.c.l.b16 %v38
  %v83 = vunpack.c.l.b16 %v39
  %v84 = vunpack.c.l.b16 %v40
  %v85 = vunpack.c.l.b16 %v41
  %v86 = vunpack.c.l.b16 %v42
  %v87 = vunpack.c.l.b16 %v43
  %v88 = vunpack.c.l.b16 %v44
  %v89 = vunpack.c.l.b16 %v45
  %v90 = vunpack.c.l.b16 %v46
  %v91 = vpack.c.b16 %v76, %v75
  %v92 = vpack.c.b16 %v78, %v77
  %v93 = vpack.c.b16 %v80, %v79
  %v94 = vpack.c.b16 %v82, %v81
  %v95 = vpack.c.b16 %v84, %v83
  %v96 = vpack.c.b16 %v86, %v85
  %v97 = vpack.c.b16 %v88, %v87
  %v98 = vpack.c.b16 %v90, %v89
  %107 = vmatprep.subr.bf16.mxu0 0
  %108 = vmatpush1.bf16.msra.mxu0 %v91
  %109 = vmatprep.subr.bf16.mxu0 0
  %110 = vmatpush1.bf16.msra.mxu0 %v92
  %111 = vmatprep.subr.bf16.mxu0 0
  %112 = vmatpush1.bf16.msra.mxu0 %v93
  %113 = vmatprep.subr.bf16.mxu0 0
  %114 = vmatpush1.bf16.msra.mxu0 %v94
  %115 = vmatprep.subr.bf16.mxu0 0
  %116 = vmatpush1.bf16.msra.mxu0 %v95
  %117 = vmatprep.subr.bf16.mxu0 0
  %118 = vmatpush1.bf16.msra.mxu0 %v96
  %119 = vmatprep.subr.bf16.mxu0 0
  %120 = vmatpush1.bf16.msra.mxu0 %v97
  %121 = vmatprep.subr.bf16.mxu0 0
  %122 = vmatpush1.bf16.msra.mxu0 %v98
  %123 = vmatprep.subr.bf16.mxu0 0
  %124 = vmatpush1.bf16.msra.mxu0 0
  %125 = vmatprep.subr.bf16.mxu0 0
  %126 = vmatpush1.bf16.msra.mxu0 0
  %127 = vmatprep.subr.bf16.mxu0 0
  %128 = vmatpush1.bf16.msra.mxu0 0
  %129 = vmatprep.subr.bf16.mxu0 0
  %130 = vmatpush1.bf16.msra.mxu0 0
  %131 = vmatprep.subr.bf16.mxu0 0
  %132 = vmatpush1.bf16.msra.mxu0 0
  %133 = vmatprep.subr.bf16.mxu0 0
  %134 = vmatpush1.bf16.msra.mxu0 0
  %135 = vmatprep.subr.bf16.mxu0 0
  %136 = vmatpush1.bf16.msra.mxu0 0
  %137 = vmatprep.subr.bf16.mxu0 0
  %138 = vmatpush1.bf16.msra.mxu0 0
  %139 = vmatprep.mubr.bf16.mxu0 0
  %140 = vmatmul.mubr.bf16.gmra.mrb[0].mxu0 %v55
  %v141 = vpop.f32.mrb[0].mxu0
  %v142 = vadd.f32 0.0, %v141
  %v143 = vpop.f32.mrb[0].mxu0
  %v144 = vpop.f32.mrb[0].mxu0
  %v145 = vadd.f32 0.0, %v144
  %v146 = vpop.f32.mrb[0].mxu0
  %147 = vmatprep.mubr.bf16.mxu0 0
  %148 = vmatmul.mubr.bf16.gmra.mrb[0].mxu0 %v56
  %v149 = vpop.f32.mrb[0].mxu0
  %v150 = vadd.f32 0.0, %v149
  %v151 = vpop.f32.mrb[0].mxu0
  %v152 = vpop.f32.mrb[0].mxu0
  %v153 = vadd.f32 0.0, %v152
  %v154 = vpop.f32.mrb[0].mxu0
  %155 = vdwg.mxu0
  %v156 = vadd.f32 %v23, %v142
  %v157 = vadd.f32 %v24, %v145
  %v158 = vadd.f32 %v25, %v150
  %v159 = vadd.f32 %v26, %v153
  %160 = vst [vmem:[#allocation2] sm:$0xff] %v156
  %161 = vst [vmem:[#allocation2 + $0x8] sm:$0xff] %v157
  %162 = vst [vmem:[#allocation2 + $0x10] sm:$0xff] %v158
  %163 = vst [vmem:[#allocation2 + $0x18] sm:$0xff] %v159
  // Predicated region
  $region18: #{a_call__.6} parent=0 // pred_check
    %p164 = pneg %p15
  $region19: #{a_call__.6} parent=0 // pred_check_branch
    %166 = sbr.rel (%p164) target = $region21
  $region20: #{a_call__.6} parent=0 // pred_region
    %v167 = vld [vmem:[#allocation2] sm:$0xff]
    %v168 = vld [vmem:[#allocation2 + $0x8] sm:$0xff]
    %v169 = vld [vmem:[#allocation2 + $0x10] sm:$0xff]
    %v170 = vld [vmem:[#allocation2 + $0x18] sm:$0xff]
    %v171 = vld [vmem:[%s2] sm:$0x1]
    %v173 = vlaneseq
    %v174 = vshrl.u32 %v173, 7
    %v175 = vsub.s32 0, %v174
    %v176 = vrot.slane %v171, %v175
    %v178 = vadd.f32 %v167, %v176
    %v179 = vadd.f32 %v168, %v176
    %v180 = vadd.f32 %v169, %v176
    %v181 = vadd.f32 %v170, %v176
    %182 = vst [vmem:[%s3] sm:$0xff] %v178
    %183 = vst [vmem:[%s3 + $0x8] sm:$0xff] %v179
    %184 = vst [vmem:[%s3 + $0x10] sm:$0xff] %v180
    %185 = vst [vmem:[%s3 + $0x18] sm:$0xff] %v181
  $region21: #{a_call__.6} parent=0 // pred_fallthru
    _
  // Predicated region
  $region22: #{a_call__.6} parent=0 // pred_check
    _
  $region23: #{a_call__.6} parent=0 // pred_check_branch
    %187 = sbr.rel (0) target = $region25
  $region24: #{a_call__.6} parent=0 // pred_region
    _
  $region25: #{a_call__.6} parent=0 // pred_fallthru
    _
  // Predicated region
  $region26: #{a_call__.6} parent=0 // pred_check
    _
  $region27: #{a_call__.6} parent=0 // pred_check_branch
    %189 = sbr.rel (0) target = $region29
  $region28: #{a_call__.6} parent=0 // pred_region
    _
  $region29: #{a_call__.6} parent=0 // pred_fallthru
    _

// kernel: a_call__.5
$region0: #{a_call__.5}
  #allocation0 [shape = 'u32[]', space=smem, size = 0x4, offset = 0x4, fixed_abs, tag = 'smem constant byte address 0x4 - core index']
  #allocation1 [shape = 'u32[144,128]{1,0:T(1,128)}', space=vmem, size = 0x12000, scoped, tag = 'internal scratch']
  #allocation2 [shape = 'f32[32,128]{1,0:T(8,128)}', space=vmem, size = 0x4000, scoped, tag = 'scratch operand']
  %s0 = inlined_call_operand.vmem [shape: bf16[32,128], index: 0, kind: input, shape index: {}]
  %s1 = inlined_call_operand.vmem [shape: bf16[128,128], index: 1, kind: input, shape index: {}]
  %s2 = inlined_call_operand.vmem [shape: f32[1,128], index: 2, kind: input, shape index: {}]
  %s3 = inlined_call_operand.vmem [shape: f32[32,128], index: 3, kind: output, shape index: {}]
  %s4 = sld [smem:[#allocation0]]
  $region30: #{a_call__.5} parent=0
    _
  %s6 = ssub.s32 1, %s4
  %s7 = scalar_select 0, %s6, %s4
  // Predicated region
  $region2: #{a_call__.5} parent=0 // pred_check
    _
  $region3: #{a_call__.5} parent=0 // pred_check_branch
    %9 = sbr.rel (0) target = $region5
  $region4: #{a_call__.5} parent=0 // pred_region
    _
  $region5: #{a_call__.5} parent=0 // pred_fallthru
    _
  // Predicated region
  $region6: #{a_call__.5} parent=0 // pred_check
    _
  $region7: #{a_call__.5} parent=0 // pred_check_branch
    %11 = sbr.rel (0) target = $region9
  $region8: #{a_call__.5} parent=0 // pred_region
    _
  $region9: #{a_call__.5} parent=0 // pred_fallthru
    _
  // Predicated region
  $region10: #{a_call__.5} parent=0 // pred_check
    _
  $region11: #{a_call__.5} parent=0 // pred_check_branch
    %13 = sbr.rel (0) target = $region13
  $region12: #{a_call__.5} parent=0 // pred_region
    _
  $region13: #{a_call__.5} parent=0 // pred_fallthru
    _
  %p15 = scmp.eq.s32.totalorder 0, 0
  // Predicated region
  $region14: #{a_call__.5} parent=0 // pred_check
    %p16 = pneg %p15
  $region15: #{a_call__.5} parent=0 // pred_check_branch
    %18 = sbr.rel (%p16) target = $region17
  $region16: #{a_call__.5} parent=0 // pred_region
    %19 = vst [vmem:[#allocation2] sm:$0xff] 0.0
    %20 = vst [vmem:[#allocation2 + $0x8] sm:$0xff] 0.0
    %21 = vst [vmem:[#allocation2 + $0x10] sm:$0xff] 0.0
    %22 = vst [vmem:[#allocation2 + $0x18] sm:$0xff] 0.0
  $region17: #{a_call__.5} parent=0 // pred_fallthru
    _
  %v23 = vld [vmem:[#allocation2] sm:$0xff]
  %v24 = vld [vmem:[#allocation2 + $0x8] sm:$0xff]
  %v25 = vld [vmem:[#allocation2 + $0x10] sm:$0xff]
  %v26 = vld [vmem:[#allocation2 + $0x18] sm:$0xff]
  %v27 = vld [vmem:[%s0] sm:$0xf]
  %v28 = vld [vmem:[%s0 + $0x4] sm:$0xf]
  %v29 = vld [vmem:[%s0 + $0x8] sm:$0xf]
  %v30 = vld [vmem:[%s0 + $0xc] sm:$0xf]
  %v31 = vld [vmem:[%s1] sm:$0xf]
  %v32 = vld [vmem:[%s1 + $0x4] sm:$0xf]
  %v33 = vld [vmem:[%s1 + $0x8] sm:$0xf]
  %v34 = vld [vmem:[%s1 + $0xc] sm:$0xf]
  %v35 = vld [vmem:[%s1 + $0x10] sm:$0xf]
  %v36 = vld [vmem:[%s1 + $0x14] sm:$0xf]
  %v37 = vld [vmem:[%s1 + $0x18] sm:$0xf]
  %v38 = vld [vmem:[%s1 + $0x1c] sm:$0xf]
  %v39 = vld [vmem:[%s1 + $0x20] sm:$0xf]
  %v40 = vld [vmem:[%s1 + $0x24] sm:$0xf]
  %v41 = vld [vmem:[%s1 + $0x28] sm:$0xf]
  %v42 = vld [vmem:[%s1 + $0x2c] sm:$0xf]
  %v43 = vld [vmem:[%s1 + $0x30] sm:$0xf]
  %v44 = vld [vmem:[%s1 + $0x34] sm:$0xf]
  %v45 = vld [vmem:[%s1 + $0x38] sm:$0xf]
  %v46 = vld [vmem:[%s1 + $0x3c] sm:$0xf]
  %v51 = vunpack.c.l.b16 %v27
  %v52 = vunpack.c.l.b16 %v28
  %v53 = vunpack.c.l.b16 %v29
  %v54 = vunpack.c.l.b16 %v30
  %v55 = vpack.c.b16 %v52, %v51
  %v56 = vpack.c.b16 %v54, %v53
  %v75 = vunpack.c.l.b16 %v31
  %v76 = vunpack.c.l.b16 %v32
  %v77 = vunpack.c.l.b16 %v33
  %v78 = vunpack.c.l.b16 %v34
  %v79 = vunpack.c.l.b16 %v35
  %v80 = vunpack.c.l.b16 %v36
  %v81 = vunpack.c.l.b16 %v37
  %v82 = vunpack.c.l.b16 %v38
  %v83 = vunpack.c.l.b16 %v39
  %v84 = vunpack.c.l.b16 %v40
  %v85 = vunpack.c.l.b16 %v41
  %v86 = vunpack.c.l.b16 %v42
  %v87 = vunpack.c.l.b16 %v43
  %v88 = vunpack.c.l.b16 %v44
  %v89 = vunpack.c.l.b16 %v45
  %v90 = vunpack.c.l.b16 %v46
  %v91 = vpack.c.b16 %v76, %v75
  %v92 = vpack.c.b16 %v78, %v77
  %v93 = vpack.c.b16 %v80, %v79
  %v94 = vpack.c.b16 %v82, %v81
  %v95 = vpack.c.b16 %v84, %v83
  %v96 = vpack.c.b16 %v86, %v85
  %v97 = vpack.c.b16 %v88, %v87
  %v98 = vpack.c.b16 %v90, %v89
  %107 = vmatprep.subr.bf16.mxu0 0
  %108 = vmatpush1.bf16.msra.mxu0 %v91
  %109 = vmatprep.subr.bf16.mxu0 0
  %110 = vmatpush1.bf16.msra.mxu0 %v92
  %111 = vmatprep.subr.bf16.mxu0 0
  %112 = vmatpush1.bf16.msra.mxu0 %v93
  %113 = vmatprep.subr.bf16.mxu0 0
  %114 = vmatpush1.bf16.msra.mxu0 %v94
  %115 = vmatprep.subr.bf16.mxu0 0
  %116 = vmatpush1.bf16.msra.mxu0 %v95
  %117 = vmatprep.subr.bf16.mxu0 0
  %118 = vmatpush1.bf16.msra.mxu0 %v96
  %119 = vmatprep.subr.bf16.mxu0 0
  %120 = vmatpush1.bf16.msra.mxu0 %v97
  %121 = vmatprep.subr.bf16.mxu0 0
  %122 = vmatpush1.bf16.msra.mxu0 %v98
  %123 = vmatprep.subr.bf16.mxu0 0
  %124 = vmatpush1.bf16.msra.mxu0 0
  %125 = vmatprep.subr.bf16.mxu0 0
  %126 = vmatpush1.bf16.msra.mxu0 0
  %127 = vmatprep.subr.bf16.mxu0 0
  %128 = vmatpush1.bf16.msra.mxu0 0
  %129 = vmatprep.subr.bf16.mxu0 0
  %130 = vmatpush1.bf16.msra.mxu0 0
  %131 = vmatprep.subr.bf16.mxu0 0
  %132 = vmatpush1.bf16.msra.mxu0 0
  %133 = vmatprep.subr.bf16.mxu0 0
  %134 = vmatpush1.bf16.msra.mxu0 0
  %135 = vmatprep.subr.bf16.mxu0 0
  %136 = vmatpush1.bf16.msra.mxu0 0
  %137 = vmatprep.subr.bf16.mxu0 0
  %138 = vmatpush1.bf16.msra.mxu0 0
  %139 = vmatprep.mubr.bf16.mxu0 0
  %140 = vmatmul.mubr.bf16.gmra.mrb[0].mxu0 %v55
  %v141 = vpop.f32.mrb[0].mxu0
  %v142 = vadd.f32 0.0, %v141
  %v143 = vpop.f32.mrb[0].mxu0
  %v144 = vpop.f32.mrb[0].mxu0
  %v145 = vadd.f32 0.0, %v144
  %v146 = vpop.f32.mrb[0].mxu0
  %147 = vmatprep.mubr.bf16.mxu0 0
  %148 = vmatmul.mubr.bf16.gmra.mrb[0].mxu0 %v56
  %v149 = vpop.f32.mrb[0].mxu0
  %v150 = vadd.f32 0.0, %v149
  %v151 = vpop.f32.mrb[0].mxu0
  %v152 = vpop.f32.mrb[0].mxu0
  %v153 = vadd.f32 0.0, %v152
  %v154 = vpop.f32.mrb[0].mxu0
  %155 = vdwg.mxu0
  %v156 = vadd.f32 %v23, %v142
  %v157 = vadd.f32 %v24, %v145
  %v158 = vadd.f32 %v25, %v150
  %v159 = vadd.f32 %v26, %v153
  %160 = vst [vmem:[#allocation2] sm:$0xff] %v156
  %161 = vst [vmem:[#allocation2 + $0x8] sm:$0xff] %v157
  %162 = vst [vmem:[#allocation2 + $0x10] sm:$0xff] %v158
  %163 = vst [vmem:[#allocation2 + $0x18] sm:$0xff] %v159
  // Predicated region
  $region18: #{a_call__.5} parent=0 // pred_check
    %p164 = pneg %p15
  $region19: #{a_call__.5} parent=0 // pred_check_branch
    %166 = sbr.rel (%p164) target = $region21
  $region20: #{a_call__.5} parent=0 // pred_region
    %v167 = vld [vmem:[#allocation2] sm:$0xff]
    %v168 = vld [vmem:[#allocation2 + $0x8] sm:$0xff]
    %v169 = vld [vmem:[#allocation2 + $0x10] sm:$0xff]
    %v170 = vld [vmem:[#allocation2 + $0x18] sm:$0xff]
    %v171 = vld [vmem:[%s2] sm:$0x1]
    %v173 = vlaneseq
    %v174 = vshrl.u32 %v173, 7
    %v175 = vsub.s32 0, %v174
    %v176 = vrot.slane %v171, %v175
    %v178 = vadd.f32 %v167, %v176
    %v179 = vadd.f32 %v168, %v176
    %v180 = vadd.f32 %v169, %v176
    %v181 = vadd.f32 %v170, %v176
    %vm182 = vcmp.ge.f32.partialorder %v178, 0.0
    %vm183 = vcmp.ge.f32.partialorder %v179, 0.0
    %vm184 = vcmp.ge.f32.partialorder %v180, 0.0
    %vm185 = vcmp.ge.f32.partialorder %v181, 0.0
    %v186 = vmul.f32 %v178, 0.2
    %v187 = vmul.f32 %v179, 0.2
    %v188 = vmul.f32 %v180, 0.2
    %v189 = vmul.f32 %v181, 0.2
    %v190 = vsel %vm182, %v178, %v186
    %v191 = vsel %vm183, %v179, %v187
    %v192 = vsel %vm184, %v180, %v188
    %v193 = vsel %vm185, %v181, %v189
    %194 = vst [vmem:[%s3] sm:$0xff] %v190
    %195 = vst [vmem:[%s3 + $0x8] sm:$0xff] %v191
    %196 = vst [vmem:[%s3 + $0x10] sm:$0xff] %v192
    %197 = vst [vmem:[%s3 + $0x18] sm:$0xff] %v193
  $region21: #{a_call__.5} parent=0 // pred_fallthru
    _
  // Predicated region
  $region22: #{a_call__.5} parent=0 // pred_check
    _
  $region23: #{a_call__.5} parent=0 // pred_check_branch
    %199 = sbr.rel (0) target = $region25
  $region24: #{a_call__.5} parent=0 // pred_region
    _
  $region25: #{a_call__.5} parent=0 // pred_fallthru
    _
  // Predicated region
  $region26: #{a_call__.5} parent=0 // pred_check
    _
  $region27: #{a_call__.5} parent=0 // pred_check_branch
    %201 = sbr.rel (0) target = $region29
  $region28: #{a_call__.5} parent=0 // pred_region
    _
  $region29: #{a_call__.5} parent=0 // pred_fallthru
    _

// kernel: squeeze.1
$region0: #{squeeze.1}
  %s0 = inlined_call_operand.vmem [shape: f32[8], index: 0, kind: input, shape index: {}]
  %s1 = inlined_call_operand.hbm [shape: f32[2,1,2,2], index: 1, kind: output, shape index: {}]
  $region1: #{squeeze.1} parent=0
    #allocation0 [shape = 'u8[2048]{0}', space=vmem, size = 0x800, scoped, tag = 'operand span for operand 1']
    #allocation1 [shape = 's32[1]{0}', space=sflag, size = 0x4, scoped, tag = 'scoped memory for squeeze.1']
    #allocation2 [shape = 'u8[8192]{0}', space=vmem, size = 0x2000, scoped, tag = 'scoped mem for output reshape']
    #allocation3 [shape = 'u8[4096]{0}', space=vmem, size = 0x1000, scoped, tag = 'scoped mem for input reshape']
    %2 = vsyncpa [#allocation1], 0
    %s4 = sshllo.u32 0, 1
    %v5 = vld [vmem:[%s0] sm:%s4]
    %6 = vst [vmem:[#allocation3] sm:%s4] %v5
    %v7 = vld [vmem:[#allocation3] sm:$0x1]
    %vm8 = vcmask 15360
    %9 = vst.msk [vmem:[#allocation2] sm:$0x1] %vm8, %v7
    %v10 = vld [vmem:[#allocation3] sm:$0x1]
    %11 = vrot.lane.b32.xlu0 %v10, 126
    %v12 = vpop.permute.xlu0 %11
    %vm13 = vcmask 15360
    %s14 = scalar_lea.vmem [#allocation2], 1
    %15 = vst.msk [vmem:[%s14] sm:$0x1] %vm13, %v12
    %v16 = vld [vmem:[#allocation3] sm:$0x1]
    %17 = vrot.lane.b32.xlu0 %v16, 124
    %v18 = vpop.permute.xlu0 %17
    %vm19 = vcmask 15360
    %s20 = scalar_lea.vmem [#allocation2], 8
    %21 = vst.msk [vmem:[%s20] sm:$0x1] %vm19, %v18
    %v22 = vld [vmem:[#allocation3] sm:$0x1]
    %23 = vrot.lane.b32.xlu0 %v22, 122
    %v24 = vpop.permute.xlu0 %23
    %vm25 = vcmask 15360
    %s26 = scalar_lea.vmem [#allocation2], 9
    %27 = vst.msk [vmem:[%s26] sm:$0x1] %vm25, %v24
    %s29 = sshllo.u32 0, 2
    %v31 = vld [vmem:[#allocation2] sm:%s29]
    %s32 = sshllo.u32 0, 2
    %33 = vst [vmem:[#allocation0] sm:%s32] %v31
    %s34 = scalar_lea.vmem [#allocation2], 8
    %v35 = vld [vmem:[%s34] sm:%s29]
    %s36 = sshllo.u32 0, 2
    %s37 = scalar_lea.vmem [#allocation0], 2
    %38 = vst [vmem:[%s37] sm:%s36] %v35
    %s40 = ssub.s32 64, 64
    %41 = vsyncadd [#allocation1], %s40
    %s43 = sshll.u32 [#allocation0], 4
    %s44 = int_to_ptr.vmem [resolvable:$true] %s43
    %46 = dma.vmem_to_hbm [thread:$0]  %s44, 64, %s1, [#allocation1]
    %47 = dma.done [#allocation1], 64
    %48 = vsyncpa [#allocation1], 1

// kernel: a_call__.7
$region0: #{a_call__.7}
  #allocation0 [shape = 'u32[]', space=smem, size = 0x4, offset = 0x4, fixed_abs, tag = 'smem constant byte address 0x4 - core index']
  #allocation1 [shape = 'u32[144,128]{1,0:T(1,128)}', space=vmem, size = 0x12000, scoped, tag = 'internal scratch']
  %s0 = inlined_call_operand.vmem [shape: f32[9,128], index: 0, kind: input, shape index: {}]
  %s1 = inlined_call_operand.vmem [shape: f32[1,128], index: 1, kind: input, shape index: {}]
  %s2 = inlined_call_operand.vmem [shape: f32[1,128], index: 2, kind: output, shape index: {}]
  %s3 = sld [smem:[#allocation0]]
  $region18: #{a_call__.7} parent=0
    _
  %s5 = ssub.s32 1, %s3
  %s6 = scalar_select 0, %s5, %s3
  // Predicated region
  $region2: #{a_call__.7} parent=0 // pred_check
    _
  $region3: #{a_call__.7} parent=0 // pred_check_branch
    %8 = sbr.rel (0) target = $region5
  $region4: #{a_call__.7} parent=0 // pred_region
    _
  $region5: #{a_call__.7} parent=0 // pred_fallthru
    _
  // Predicated region
  $region6: #{a_call__.7} parent=0 // pred_check
    _
  $region7: #{a_call__.7} parent=0 // pred_check_branch
    %10 = sbr.rel (0) target = $region9
  $region8: #{a_call__.7} parent=0 // pred_region
    _
  $region9: #{a_call__.7} parent=0 // pred_fallthru
    _
  %v11 = vld [vmem:[%s0] sm:$0xff]
  %v12 = vld [vmem:[%s0 + $0x8] sm:$0x1]
  %vm13 = vcmask 1040384
  %v14 = vsel %vm13, %v12, 0.0
  %v15 = vadd.f32 %v11, %v14
  %v16 = vrot.slane %v15, 4
  %v17 = vadd.f32 %v15, %v16
  %v18 = vrot.slane %v17, 2
  %v19 = vadd.f32 %v17, %v18
  %v20 = vrot.slane %v19, 1
  %v21 = vadd.f32 %v19, %v20
  %v22 = vld [vmem:[%s1] sm:$0x1]
  %v23 = vmul.f32 %v21, %v22
  %v24 = vmul.f32 %v23, 0.5
  %v25 = vtanh.pop %v24
  %v26 = vadd.f32 %v25, 1.0
  %v27 = vmul.f32 %v26, 0.5
  %28 = vst [vmem:[%s2] sm:$0x1] %v27
  // Predicated region
  $region10: #{a_call__.7} parent=0 // pred_check
    _
  $region11: #{a_call__.7} parent=0 // pred_check_branch
    %30 = sbr.rel (0) target = $region13
  $region12: #{a_call__.7} parent=0 // pred_region
    _
  $region13: #{a_call__.7} parent=0 // pred_fallthru
    _
  // Predicated region
  $region14: #{a_call__.7} parent=0 // pred_check
    _
  $region15: #{a_call__.7} parent=0 // pred_check_branch
    %32 = sbr.rel (0) target = $region17
  $region16: #{a_call__.7} parent=0 // pred_region
    _
  $region17: #{a_call__.7} parent=0 // pred_fallthru
    _

</llo_original>
